<compile_context>
chip_gen: v7x
topology: tpu7x:2x2x1
jax: 0.10.0
libtpu: 0.0.40
codegen_flags: <defaults>
</compile_context>

<pallas_src>
from functools import partial

import jax
import jax.numpy as jnp
from jax.experimental import pallas as pl
from jax.experimental.pallas import tpu as pltpu


LANE = 128             # pad hidden dim to a multiple of the lane width
DEF_BLOCK_ROWS = 512   # default row tile for the layer matmul
DEF_BLOCK_K = 1024     # default contraction tile for the layer matmul
ADJ_Q_SCALE = 1.0 / 127.0   # fixed int8 dequant scale; A_hat entries lie in [0, 1]


def _round_up(n, m):
    return ((n + m - 1) // m) * m


def _pick_tiles(n, block_rows, block_k):
    """Pad node count and pick (row, contraction) tiles that divide it evenly."""
    npad = _round_up(n, LANE)
    tm = max(8, min(block_rows, npad))
    npad = _round_up(npad, tm)
    # Largest contraction tile <= block_k that is a multiple of tm, a multiple of
    # the lane width, and divides npad (fallback: full contraction in one tile).
    tk = npad
    cand = tm
    while cand <= min(block_k, npad):
        if cand % LANE == 0 and npad % cand == 0:
            tk = cand
        cand += tm
    return npad, tm, tk


def _vmem_limit_bytes():
    """~3/4 of physical VMEM: ~96 MiB on v5e/v6e (128 MiB), ~48 MiB on v7x (64 MiB)."""
    try:
        cap = int(pltpu.get_tpu_info().vmem_capacity_bytes)
    except Exception:
        cap = 64 * 1024 * 1024
    return int(cap * 3 // 4)


# ---------------------------------------------------------------------------
# Kernel 1: xemb Linear  h0 = x @ W.T + b  (bf16 operands, f32 MXU accumulate,
# lane-dense hpad output, padded rows forced to zero).
# ---------------------------------------------------------------------------
def _xemb_kernel(x_ref, w_ref, b_ref, o_ref, *, n_valid, tile_rows):
    h = jnp.dot(x_ref[...], w_ref[...], preferred_element_type=jnp.float32)
    h = h + b_ref[...]
    row = pl.program_id(0) * tile_rows + jax.lax.broadcasted_iota(
        jnp.int32, h.shape, 0)
    o_ref[...] = jnp.where(row < n_valid, h, 0.0).astype(o_ref.dtype)


# ---------------------------------------------------------------------------
# Kernel 2a: intermediate PureConv layer  h_out(bf16) = A_hat @ h_in
#   A tile streamed (int8 or bf16), h fully VMEM-resident (sliced with pl.ds),
#   f32 scratch accumulator, pl.when init/finalize over the K grid axis.
# ---------------------------------------------------------------------------
def _layer_kernel_acc(a_ref, h_ref, o_ref, acc_ref, *, tk, dequant_scale):
    k = pl.program_id(1)

    @pl.when(k == 0)
    def _init():
        acc_ref[...] = jnp.zeros_like(acc_ref)

    a = a_ref[...]
    if dequant_scale is not None:           # int8 -> bf16 widen (values <= 127: exact)
        a = a.astype(jnp.bfloat16)
    k0 = pl.multiple_of(k * tk, tk)
    acc_ref[...] += jnp.dot(a, h_ref[pl.ds(k0, tk), :],
                            preferred_element_type=jnp.float32)

    @pl.when(k == pl.num_programs(1) - 1)
    def _fin():
        out = acc_ref[...]
        if dequant_scale is not None:       # apply global dequant scale once
            out = out * dequant_scale
        o_ref[...] = out.astype(o_ref.dtype)


# ---------------------------------------------------------------------------
# Kernel 2b: final PureConv layer, f32 output — accumulate directly into the
# (resident-across-K) output block; no scratch, no extra copy.
# ---------------------------------------------------------------------------
def _layer_kernel_f32out(a_ref, h_ref, o_ref, *, tk, dequant_scale):
    k = pl.program_id(1)

    @pl.when(k == 0)
    def _init():
        o_ref[...] = jnp.zeros_like(o_ref)

    a = a_ref[...]
    if dequant_scale is not None:
        a = a.astype(jnp.bfloat16)
    k0 = pl.multiple_of(k * tk, tk)
    o_ref[...] += jnp.dot(a, h_ref[pl.ds(k0, tk), :],
                          preferred_element_type=jnp.float32)

    if dequant_scale is not None:
        @pl.when(k == pl.num_programs(1) - 1)
        def _fin():
            o_ref[...] = o_ref[...] * dequant_scale


# ---------------------------------------------------------------------------
# Fused A_hat construction (padded, low precision) — single-pass friendly.
# ---------------------------------------------------------------------------
def _build_a_hat_padded(adj, npad, quantize):
    n = adj.shape[0]
    adj = adj.astype(jnp.float32)
    norm = jax.lax.rsqrt(1.0 + adj.sum(axis=-1))                    # [N]
    norm_p = jnp.zeros((npad,), jnp.float32).at[:n].set(norm)       # 0 on padded rows
    adj_p = jnp.zeros((npad, npad), jnp.float32).at[:n, :n].set(adj)
    ii = jax.lax.broadcasted_iota(jnp.int32, (npad, npad), 0)
    jj = jax.lax.broadcasted_iota(jnp.int32, (npad, npad), 1)
    # (A + I) with both norm scalings and the cast fused; padded rows/cols exactly 0.
    a = (adj_p + jnp.where(ii == jj, 1.0, 0.0)) * norm_p[:, None] * norm_p[None, :]
    if quantize:
        # Entries are in [0, 1] for a 0/1 adjacency -> fixed global scale 1/127.
        return jnp.clip(jnp.round(a * 127.0), 0.0, 127.0).astype(jnp.int8)
    return a.astype(jnp.bfloat16)


# ---------------------------------------------------------------------------
# Forward wrapper
# ---------------------------------------------------------------------------
@partial(jax.jit,
         static_argnames=("num_layers", "quantize_adj", "block_rows", "block_k"))
def gcn_forward(x, adj, w, b, *, num_layers=2, quantize_adj=True,
                block_rows=DEF_BLOCK_ROWS, block_k=DEF_BLOCK_K):
    """x: [N, Fin] f32, adj: [N, N] dense 0/1, w: [H, Fin] (PyTorch layout), b: [H]."""
    assert num_layers >= 1
    n, fin = x.shape
    hdim = w.shape[0]
    npad, tm, tk = _pick_tiles(n, block_rows, block_k)
    hpad = _round_up(hdim, LANE)
    vmem_limit = _vmem_limit_bytes()

    # ---- one-time precompute (fused under jit; no eye / extra f32 copies) ----
    a_hat = _build_a_hat_padded(adj, npad, quantize_adj)
    x_p = jnp.zeros((npad, fin), jnp.bfloat16).at[:n, :].set(x.astype(jnp.bfloat16))
    w_t = jnp.zeros((fin, hpad), jnp.bfloat16).at[:, :hdim].set(w.T.astype(jnp.bfloat16))
    b_p = jnp.zeros((1, hpad), jnp.float32).at[0, :hdim].set(b.astype(jnp.float32))

    # ---- xemb Linear (tiled over rows; padded rows of h0 are zeroed) ----
    xemb_tile = tk                      # tk divides npad by construction
    h = pl.pallas_call(
        partial(_xemb_kernel, n_valid=n, tile_rows=xemb_tile),
        out_shape=jax.ShapeDtypeStruct((npad, hpad), jnp.bfloat16),
        grid_spec=pltpu.PrefetchScalarGridSpec(
            num_scalar_prefetch=0,
            grid=(npad // xemb_tile,),
            in_specs=[
                pl.BlockSpec((xemb_tile, fin), lambda i: (i, 0)),
                pl.BlockSpec((fin, hpad), lambda i: (0, 0)),
                pl.BlockSpec((1, hpad), lambda i: (0, 0)),
            ],
            out_specs=pl.BlockSpec((xemb_tile, hpad), lambda i: (i, 0)),
        ),
        compiler_params=pltpu.CompilerParams(
            dimension_semantics=("parallel",),
            vmem_limit_bytes=vmem_limit),
    )(x_p, w_t, b_p)

    # ---- PureConv layers: h = A_hat @ h ----
    dequant_scale = ADJ_Q_SCALE if quantize_adj else None
    a_bytes = 1 if quantize_adj else 2
    layer_cost = pl.CostEstimate(
        flops=2 * npad * npad * hpad,
        transcendentals=0,
        bytes_accessed=npad * npad * a_bytes + npad * hpad * 2 + npad * hpad * 4)

    grid = (npad // tm, npad // tk)     # rows "parallel" (2-TC sharding), K last
    a_spec = pl.BlockSpec((tm, tk), lambda i, k: (i, k))
    # h fully resident in VMEM across the whole grid (constant index map); the
    # kernel slices its (tk, hpad) K-chunk with pl.ds -> no re-streaming from HBM.
    h_spec = pl.BlockSpec((npad, hpad), lambda i, k: (0, 0))
    o_spec = pl.BlockSpec((tm, hpad), lambda i, k: (i, 0))
    cparams = pltpu.CompilerParams(
        dimension_semantics=("parallel", "arbitrary"),
        vmem_limit_bytes=vmem_limit)

    def mid_layer(h_in):
        return pl.pallas_call(
            partial(_layer_kernel_acc, tk=tk, dequant_scale=dequant_scale),
            out_shape=jax.ShapeDtypeStruct((npad, hpad), jnp.bfloat16),
            grid_spec=pltpu.PrefetchScalarGridSpec(
                num_scalar_prefetch=0, grid=grid,
                in_specs=[a_spec, h_spec], out_specs=o_spec,
                scratch_shapes=[pltpu.VMEM((tm, hpad), jnp.float32)]),
            compiler_params=cparams, cost_estimate=layer_cost,
        )(a_hat, h_in)

    def last_layer(h_in):
        return pl.pallas_call(
            partial(_layer_kernel_f32out, tk=tk, dequant_scale=dequant_scale),
            out_shape=jax.ShapeDtypeStruct((npad, hpad), jnp.float32),
            grid_spec=pltpu.PrefetchScalarGridSpec(
                num_scalar_prefetch=0, grid=grid,
                in_specs=[a_spec, h_spec], out_specs=o_spec),
            compiler_params=cparams, cost_estimate=layer_cost,
        )(a_hat, h_in)

    for _ in range(num_layers - 1):
        h = mid_layer(h)
    h = last_layer(h)
    return h[:n, :hdim]


# ---------------------------------------------------------------------------
# Pure-JAX references
# ---------------------------------------------------------------------------
def gcn_reference(x, adj, w, b, *, num_layers=2):
    """f32 reference mirroring the PyTorch forward (original op order)."""
    h = x @ w.T + b
    norm = jax.lax.rsqrt(1.0 + adj.sum(-1, keepdims=True))
    for _ in range(num_layers):
        h = norm * h
        h = adj @ h + h
        h = norm * h
    return h


def _a_hat_exact(adj):
    adj = adj.astype(jnp.float32)
    norm = jax.lax.rsqrt(1.0 + adj.sum(-1))
    return norm[:, None] * (adj + jnp.eye(adj.shape[0], dtype=jnp.float32)) * norm[None, :]


def _reference_from_a_hat(x, a_hat, w, b, num_layers):
    h = x @ w.T + b
    for _ in range(num_layers):
        h = a_hat @ h
    return h


if __name__ == "__main__":
    IN_CH, HIDDEN, NUM_LAYERS = 16, 32, 2
    key = jax.random.PRNGKey(0)
    kx1, ka1, kw, kb, kx2, ka2 = jax.random.split(key, 6)

    def make_graph(kx_, ka_, n):
        x = jax.random.normal(kx_, (n, IN_CH), dtype=jnp.float32)
        a = (jax.random.uniform(ka_, (n, n)) < 0.1).astype(jnp.float32)
        adj = jnp.maximum(a, a.T) * (1.0 - jnp.eye(n, dtype=jnp.float32))
        return x, adj

    # xemb Linear(in_channels, hidden) parameters (synthetic init).
    w = jax.random.normal(kw, (HIDDEN, IN_CH), dtype=jnp.float32) / jnp.sqrt(IN_CH)
    b = jax.random.normal(kb, (HIDDEN,), dtype=jnp.float32) * 0.01

    # ---- Case 1: int8-quantized A_hat (recommended bandwidth-bound config) ----
    # Verified against a reference built from the SAME dequantized A_hat, so the
    # tolerance only has to cover bf16 operand rounding (not quantization).
    N1 = 64
    x1, adj1 = make_graph(kx1, ka1, N1)
    out1 = jax.block_until_ready(
        gcn_forward(x1, adj1, w, b, num_layers=NUM_LAYERS, quantize_adj=True))
    a_hat1 = _a_hat_exact(adj1)
    a_hat1_dq = jnp.clip(jnp.round(a_hat1 * 127.0), 0.0, 127.0) * ADJ_Q_SCALE
    ref1 = _reference_from_a_hat(x1, a_hat1_dq, w, b, NUM_LAYERS)
    assert out1.shape == (N1, HIDDEN)
    assert jnp.allclose(out1, ref1, rtol=3e-2, atol=3e-2), \
        "Pallas (int8 A_hat) output mismatch vs dequantized reference"

    # ---- Case 2: exact bf16 A_hat with a multi-tile (rows x K) grid ----
    # Small tile overrides exercise the K-loop / pl.ds / pl.when paths.
    # bf16 operand rounding vs the f32 reference => loosened tolerance.
    N2 = 200
    x2, adj2 = make_graph(kx2, ka2, N2)
    out2 = jax.block_until_ready(
        gcn_forward(x2, adj2, w, b, num_layers=NUM_LAYERS, quantize_adj=False,
                    block_rows=64, block_k=128))
    ref2 = gcn_reference(x2, adj2, w, b, num_layers=NUM_LAYERS)
    assert out2.shape == (N2, HIDDEN)
    assert jnp.allclose(out2, ref2, rtol=5e-2, atol=5e-2), \
        "Pallas (bf16 A_hat) output mismatch vs f32 reference"

    print("KERNEL_OK")
</pallas_src>

<mosaic_0001>
module attributes {stable_mosaic.version = 11 : i64} {
  func.func @_layer_kernel_acc(%arg0: i32, %arg1: i32, %arg2: memref<128x128xi8, #tpu.memory_space<vmem>>, %arg3: memref<128x128xbf16, #tpu.memory_space<vmem>>, %arg4: memref<128x128xbf16, #tpu.memory_space<vmem>>, %arg5: memref<128x128xf32, #tpu.memory_space<vmem>>) attributes {dimension_semantics = [#tpu.dimension_semantics<parallel>, #tpu.dimension_semantics<arbitrary>], iteration_bounds = array<i64: 1, 1>, scalar_prefetch = 0 : i64, scratch_operands = 1 : i64, tpu.core_type = #tpu.core_type<tc>, window_params = [{transform_indices = @transform_0, window_bounds = array<i64: 128, 128>}, {pipeline_mode = #tpu.pipeline_mode<synchronous>, transform_indices = @transform_1, window_bounds = array<i64: 128, 128>}, {transform_indices = @transform_2, window_bounds = array<i64: 128, 128>}]} {
    %c0_i32 = arith.constant 0 : i32
    %0 = arith.cmpi eq, %arg1, %c0_i32 : i32
    %1 = arith.extui %0 : i1 to i32
    %c0_i32_0 = arith.constant 0 : i32
    %2 = arith.cmpi ne, %1, %c0_i32_0 : i32
    scf.if %2 {
      %cst_9 = arith.constant 0.000000e+00 : f32
      %16 = vector.broadcast %cst_9 : f32 to vector<128x128xf32>
      %c0_10 = arith.constant 0 : index
      %c0_11 = arith.constant 0 : index
      %17 = vector.load %arg5[%c0_10, %c0_11] : memref<128x128xf32, #tpu.memory_space<vmem>>, vector<128x128xf32>
      tpu.vector_store %arg5[%c0_10, %c0_11], %16 {strides = array<i32>} : memref<128x128xf32, #tpu.memory_space<vmem>>, vector<128x128xf32>,
    } else {
    }
    %c0 = arith.constant 0 : index
    %c0_1 = arith.constant 0 : index
    %3 = vector.load %arg2[%c0, %c0_1] : memref<128x128xi8, #tpu.memory_space<vmem>>, vector<128x128xi8>
    %4 = arith.sitofp %3 : vector<128x128xi8> to vector<128x128xbf16>
    %c128_i32 = arith.constant 128 : i32
    %5 = arith.muli %arg1, %c128_i32 : i32
    %6 = tpu.assume_multiple %5, 128 : i32
    %c0_2 = arith.constant 0 : index
    %c0_3 = arith.constant 0 : index
    %7 = vector.load %arg5[%c0_2, %c0_3] : memref<128x128xf32, #tpu.memory_space<vmem>>, vector<128x128xf32>
    %8 = arith.index_cast %6 : i32 to index
    %c0_4 = arith.constant 0 : index
    %9 = vector.load %arg3[%8, %c0_4] : memref<128x128xbf16, #tpu.memory_space<vmem>>, vector<128x128xbf16>
    %cst = arith.constant dense<0.000000e+00> : vector<128x128xf32>
    %10 = tpu.matmul %4, %9, %cst {dimension_numbers = #tpu.dot_dimension_numbers<[1], [0], [0], [1], [0, 0, 1, 1], [], []>} : vector<128x128xbf16>, vector<128x128xbf16>, vector<128x128xf32> -> vector<128x128xf32>
    %11 = arith.addf %7, %10 : vector<128x128xf32>
    %c0_5 = arith.constant 0 : index
    %c0_6 = arith.constant 0 : index
    %12 = vector.load %arg5[%c0_5, %c0_6] : memref<128x128xf32, #tpu.memory_space<vmem>>, vector<128x128xf32>
    tpu.vector_store %arg5[%c0_5, %c0_6], %11 {strides = array<i32>} : memref<128x128xf32, #tpu.memory_space<vmem>>, vector<128x128xf32>,
    %c0_i32_7 = arith.constant 0 : i32
    %13 = arith.cmpi eq, %arg1, %c0_i32_7 : i32
    %14 = arith.extui %13 : i1 to i32
    %c0_i32_8 = arith.constant 0 : i32
    %15 = arith.cmpi ne, %14, %c0_i32_8 : i32
    scf.if %15 {
      %c0_9 = arith.constant 0 : index
      %c0_10 = arith.constant 0 : index
      %16 = vector.load %arg5[%c0_9, %c0_10] : memref<128x128xf32, #tpu.memory_space<vmem>>, vector<128x128xf32>
      %cst_11 = arith.constant 0.00787401571 : f32
      %17 = vector.broadcast %cst_11 : f32 to vector<128x128xf32>
      %18 = arith.mulf %16, %17 : vector<128x128xf32>
      %19 = arith.truncf %18 : vector<128x128xf32> to vector<128x128xbf16>
      %c0_12 = arith.constant 0 : index
      %c0_13 = arith.constant 0 : index
      %20 = vector.load %arg4[%c0_12, %c0_13] : memref<128x128xbf16, #tpu.memory_space<vmem>>, vector<128x128xbf16>
      tpu.vector_store %arg4[%c0_12, %c0_13], %19 {strides = array<i32>} : memref<128x128xbf16, #tpu.memory_space<vmem>>, vector<128x128xbf16>,
    } else {
    }
    return
  }
  func.func @transform_0(%arg0: i32, %arg1: i32) -> (i32, i32) {
    %c0_i32 = arith.constant 0 : i32
    return %arg0, %arg1 : i32, i32
  }
  func.func @transform_1(%arg0: i32, %arg1: i32) -> (i32, i32) {
    %c0_i32 = arith.constant 0 : i32
    %c0_i32_0 = arith.constant 0 : i32
    %c0_i32_1 = arith.constant 0 : i32
    return %c0_i32, %c0_i32_0 : i32, i32
  }
  func.func @transform_2(%arg0: i32, %arg1: i32) -> (i32, i32) {
    %c0_i32 = arith.constant 0 : i32
    %c0_i32_0 = arith.constant 0 : i32
    return %arg0, %c0_i32 : i32, i32
  }
}

module attributes {stable_mosaic.version = 11 : i64} {
  func.func @_xemb_kernel(%arg0: i32, %arg1: memref<128x16xbf16, #tpu.memory_space<vmem>>, %arg2: memref<16x128xbf16, #tpu.memory_space<vmem>>, %arg3: memref<1x128xf32, #tpu.memory_space<vmem>>, %arg4: memref<128x128xbf16, #tpu.memory_space<vmem>>) attributes {dimension_semantics = [#tpu.dimension_semantics<parallel>], iteration_bounds = array<i64: 1>, scalar_prefetch = 0 : i64, scratch_operands = 0 : i64, tpu.core_type = #tpu.core_type<tc>, window_params = [{transform_indices = @transform_0, window_bounds = array<i64: 128, 16>}, {pipeline_mode = #tpu.pipeline_mode<synchronous>, transform_indices = @transform_1, window_bounds = array<i64: 16, 128>}, {pipeline_mode = #tpu.pipeline_mode<synchronous>, transform_indices = @transform_2, window_bounds = array<i64: 1, 128>}, {transform_indices = @transform_3, window_bounds = array<i64: 128, 128>}]} {
    %c0 = arith.constant 0 : index
    %c0_0 = arith.constant 0 : index
    %0 = vector.load %arg1[%c0, %c0_0] : memref<128x16xbf16, #tpu.memory_space<vmem>>, vector<128x16xbf16>
    %c0_1 = arith.constant 0 : index
    %c0_2 = arith.constant 0 : index
    %1 = vector.load %arg2[%c0_1, %c0_2] : memref<16x128xbf16, #tpu.memory_space<vmem>>, vector<16x128xbf16>
    %cst = arith.constant dense<0.000000e+00> : vector<128x128xf32>
    %2 = tpu.matmul %0, %1, %cst {dimension_numbers = #tpu.dot_dimension_numbers<[1], [0], [0], [1], [0, 0, 1, 1], [], []>} : vector<128x16xbf16>, vector<16x128xbf16>, vector<128x128xf32> -> vector<128x128xf32>
    %c0_3 = arith.constant 0 : index
    %c0_4 = arith.constant 0 : index
    %3 = vector.load %arg3[%c0_3, %c0_4] : memref<1x128xf32, #tpu.memory_space<vmem>>, vector<1x128xf32>
    %4 = vector.broadcast %3 : vector<1x128xf32> to vector<128x128xf32>
    %5 = arith.addf %2, %4 : vector<128x128xf32>
    %c128_i32 = arith.constant 128 : i32
    %6 = arith.muli %arg0, %c128_i32 : i32
    %7 = tpu.iota {dimensions = array<i32: 0>} : vector<128x128xi32>
    %8 = vector.broadcast %6 : i32 to vector<128x128xi32>
    %9 = arith.addi %8, %7 : vector<128x128xi32>
    %c64_i32 = arith.constant 64 : i32
    %10 = vector.broadcast %c64_i32 : i32 to vector<128x128xi32>
    %11 = arith.cmpi slt, %9, %10 : vector<128x128xi32>
    %cst_5 = arith.constant 0.000000e+00 : f32
    %12 = vector.broadcast %cst_5 : f32 to vector<128x128xf32>
    %13 = arith.select %11, %5, %12 : vector<128x128xi1>, vector<128x128xf32>
    %14 = arith.truncf %13 : vector<128x128xf32> to vector<128x128xbf16>
    %c0_6 = arith.constant 0 : index
    %c0_7 = arith.constant 0 : index
    %15 = vector.load %arg4[%c0_6, %c0_7] : memref<128x128xbf16, #tpu.memory_space<vmem>>, vector<128x128xbf16>
    tpu.vector_store %arg4[%c0_6, %c0_7], %14 {strides = array<i32>} : memref<128x128xbf16, #tpu.memory_space<vmem>>, vector<128x128xbf16>,
    return
  }
  func.func @transform_0(%arg0: i32) -> (i32, i32) {
    %c0_i32 = arith.constant 0 : i32
    %c0_i32_0 = arith.constant 0 : i32
    return %arg0, %c0_i32 : i32, i32
  }
  func.func @transform_1(%arg0: i32) -> (i32, i32) {
    %c0_i32 = arith.constant 0 : i32
    %c0_i32_0 = arith.constant 0 : i32
    %c0_i32_1 = arith.constant 0 : i32
    return %c0_i32, %c0_i32_0 : i32, i32
  }
  func.func @transform_2(%arg0: i32) -> (i32, i32) {
    %c0_i32 = arith.constant 0 : i32
    %c0_i32_0 = arith.constant 0 : i32
    %c0_i32_1 = arith.constant 0 : i32
    return %c0_i32, %c0_i32_0 : i32, i32
  }
  func.func @transform_3(%arg0: i32) -> (i32, i32) {
    %c0_i32 = arith.constant 0 : i32
    %c0_i32_0 = arith.constant 0 : i32
    return %arg0, %c0_i32 : i32, i32
  }
}

module attributes {stable_mosaic.version = 11 : i64} {
  func.func @_layer_kernel_f32out(%arg0: i32, %arg1: i32, %arg2: memref<128x128xi8, #tpu.memory_space<vmem>>, %arg3: memref<128x128xbf16, #tpu.memory_space<vmem>>, %arg4: memref<128x128xf32, #tpu.memory_space<vmem>>) attributes {dimension_semantics = [#tpu.dimension_semantics<parallel>, #tpu.dimension_semantics<arbitrary>], iteration_bounds = array<i64: 1, 1>, scalar_prefetch = 0 : i64, scratch_operands = 0 : i64, tpu.core_type = #tpu.core_type<tc>, window_params = [{transform_indices = @transform_0, window_bounds = array<i64: 128, 128>}, {pipeline_mode = #tpu.pipeline_mode<synchronous>, transform_indices = @transform_1, window_bounds = array<i64: 128, 128>}, {transform_indices = @transform_2, window_bounds = array<i64: 128, 128>}]} {
    %c0_i32 = arith.constant 0 : i32
    %0 = arith.cmpi eq, %arg1, %c0_i32 : i32
    %1 = arith.extui %0 : i1 to i32
    %c0_i32_0 = arith.constant 0 : i32
    %2 = arith.cmpi ne, %1, %c0_i32_0 : i32
    scf.if %2 {
      %cst_9 = arith.constant 0.000000e+00 : f32
      %16 = vector.broadcast %cst_9 : f32 to vector<128x128xf32>
      %c0_10 = arith.constant 0 : index
      %c0_11 = arith.constant 0 : index
      %17 = vector.load %arg4[%c0_10, %c0_11] : memref<128x128xf32, #tpu.memory_space<vmem>>, vector<128x128xf32>
      tpu.vector_store %arg4[%c0_10, %c0_11], %16 {strides = array<i32>} : memref<128x128xf32, #tpu.memory_space<vmem>>, vector<128x128xf32>,
    } else {
    }
    %c0 = arith.constant 0 : index
    %c0_1 = arith.constant 0 : index
    %3 = vector.load %arg2[%c0, %c0_1] : memref<128x128xi8, #tpu.memory_space<vmem>>, vector<128x128xi8>
    %4 = arith.sitofp %3 : vector<128x128xi8> to vector<128x128xbf16>
    %c128_i32 = arith.constant 128 : i32
    %5 = arith.muli %arg1, %c128_i32 : i32
    %6 = tpu.assume_multiple %5, 128 : i32
    %c0_2 = arith.constant 0 : index
    %c0_3 = arith.constant 0 : index
    %7 = vector.load %arg4[%c0_2, %c0_3] : memref<128x128xf32, #tpu.memory_space<vmem>>, vector<128x128xf32>
    %8 = arith.index_cast %6 : i32 to index
    %c0_4 = arith.constant 0 : index
    %9 = vector.load %arg3[%8, %c0_4] : memref<128x128xbf16, #tpu.memory_space<vmem>>, vector<128x128xbf16>
    %cst = arith.constant dense<0.000000e+00> : vector<128x128xf32>
    %10 = tpu.matmul %4, %9, %cst {dimension_numbers = #tpu.dot_dimension_numbers<[1], [0], [0], [1], [0, 0, 1, 1], [], []>} : vector<128x128xbf16>, vector<128x128xbf16>, vector<128x128xf32> -> vector<128x128xf32>
    %11 = arith.addf %7, %10 : vector<128x128xf32>
    %c0_5 = arith.constant 0 : index
    %c0_6 = arith.constant 0 : index
    %12 = vector.load %arg4[%c0_5, %c0_6] : memref<128x128xf32, #tpu.memory_space<vmem>>, vector<128x128xf32>
    tpu.vector_store %arg4[%c0_5, %c0_6], %11 {strides = array<i32>} : memref<128x128xf32, #tpu.memory_space<vmem>>, vector<128x128xf32>,
    %c0_i32_7 = arith.constant 0 : i32
    %13 = arith.cmpi eq, %arg1, %c0_i32_7 : i32
    %14 = arith.extui %13 : i1 to i32
    %c0_i32_8 = arith.constant 0 : i32
    %15 = arith.cmpi ne, %14, %c0_i32_8 : i32
    scf.if %15 {
      %c0_9 = arith.constant 0 : index
      %c0_10 = arith.constant 0 : index
      %16 = vector.load %arg4[%c0_9, %c0_10] : memref<128x128xf32, #tpu.memory_space<vmem>>, vector<128x128xf32>
      %cst_11 = arith.constant 0.00787401571 : f32
      %17 = vector.broadcast %cst_11 : f32 to vector<128x128xf32>
      %18 = arith.mulf %16, %17 : vector<128x128xf32>
      %c0_12 = arith.constant 0 : index
      %c0_13 = arith.constant 0 : index
      %19 = vector.load %arg4[%c0_12, %c0_13] : memref<128x128xf32, #tpu.memory_space<vmem>>, vector<128x128xf32>
      tpu.vector_store %arg4[%c0_12, %c0_13], %18 {strides = array<i32>} : memref<128x128xf32, #tpu.memory_space<vmem>>, vector<128x128xf32>,
    } else {
    }
    return
  }
  func.func @transform_0(%arg0: i32, %arg1: i32) -> (i32, i32) {
    %c0_i32 = arith.constant 0 : i32
    return %arg0, %arg1 : i32, i32
  }
  func.func @transform_1(%arg0: i32, %arg1: i32) -> (i32, i32) {
    %c0_i32 = arith.constant 0 : i32
    %c0_i32_0 = arith.constant 0 : i32
    %c0_i32_1 = arith.constant 0 : i32
    return %c0_i32, %c0_i32_0 : i32, i32
  }
  func.func @transform_2(%arg0: i32, %arg1: i32) -> (i32, i32) {
    %c0_i32 = arith.constant 0 : i32
    %c0_i32_0 = arith.constant 0 : i32
    return %arg0, %c0_i32 : i32, i32
  }
}

</mosaic_0001>

<llo_original>
// kernel: gcn_forward.4
$region0: #{gcn_forward.4}
  #allocation0 [shape = 'u32[]', space=smem, size = 0x4, offset = 0x4, fixed_abs, tag = 'smem constant byte address 0x4 - core index']
  #allocation1 [shape = 'u32[144,128]{1,0:T(1,128)}', space=vmem, size = 0x12000, scoped, tag = 'internal scratch']
  #allocation2 [shape = 'f32[128,128]{1,0:T(8,128)}', space=vmem, size = 0x10000, scoped, tag = 'scratch operand']
  %s0 = inlined_call_operand.vmem [shape: s8[128,128], index: 0, kind: input, shape index: {}]
  %s1 = inlined_call_operand.vmem [shape: bf16[128,128], index: 1, kind: input, shape index: {}]
  %s2 = inlined_call_operand.vmem [shape: bf16[128,128], index: 2, kind: output, shape index: {}]
  %s3 = sld [smem:[#allocation0]]
  $region26: #{gcn_forward.4} parent=0
    _
  %s5 = ssub.s32 1, %s3
  %s6 = scalar_select 0, %s5, %s3
  // Predicated region
  $region2: #{gcn_forward.4} parent=0 // pred_check
    _
  $region3: #{gcn_forward.4} parent=0 // pred_check_branch
    %8 = sbr.rel (0) target = $region5
  $region4: #{gcn_forward.4} parent=0 // pred_region
    _
  $region5: #{gcn_forward.4} parent=0 // pred_fallthru
    _
  // Predicated region
  $region6: #{gcn_forward.4} parent=0 // pred_check
    _
  $region7: #{gcn_forward.4} parent=0 // pred_check_branch
    %10 = sbr.rel (0) target = $region9
  $region8: #{gcn_forward.4} parent=0 // pred_region
    _
  $region9: #{gcn_forward.4} parent=0 // pred_fallthru
    _
  %p12 = scmp.eq.s32.totalorder 0, 0
  // Predicated region
  $region10: #{gcn_forward.4} parent=0 // pred_check
    %p13 = pneg %p12
  $region11: #{gcn_forward.4} parent=0 // pred_check_branch
    %15 = sbr.rel (%p13) target = $region13
  $region12: #{gcn_forward.4} parent=0 // pred_region
    %16 = vst [vmem:[#allocation2] sm:$0xff] 0.0
    %17 = vst [vmem:[#allocation2 + $0x8] sm:$0xff] 0.0
    %18 = vst [vmem:[#allocation2 + $0x10] sm:$0xff] 0.0
    %19 = vst [vmem:[#allocation2 + $0x18] sm:$0xff] 0.0
    %20 = vst [vmem:[#allocation2 + $0x20] sm:$0xff] 0.0
    %21 = vst [vmem:[#allocation2 + $0x28] sm:$0xff] 0.0
    %22 = vst [vmem:[#allocation2 + $0x30] sm:$0xff] 0.0
    %23 = vst [vmem:[#allocation2 + $0x38] sm:$0xff] 0.0
    %24 = vst [vmem:[#allocation2 + $0x40] sm:$0xff] 0.0
    %25 = vst [vmem:[#allocation2 + $0x48] sm:$0xff] 0.0
    %26 = vst [vmem:[#allocation2 + $0x50] sm:$0xff] 0.0
    %27 = vst [vmem:[#allocation2 + $0x58] sm:$0xff] 0.0
    %28 = vst [vmem:[#allocation2 + $0x60] sm:$0xff] 0.0
    %29 = vst [vmem:[#allocation2 + $0x68] sm:$0xff] 0.0
    %30 = vst [vmem:[#allocation2 + $0x70] sm:$0xff] 0.0
    %31 = vst [vmem:[#allocation2 + $0x78] sm:$0xff] 0.0
  $region13: #{gcn_forward.4} parent=0 // pred_fallthru
    _
  %v32 = vld [vmem:[%s0] sm:$0xff]
  %v33 = vld [vmem:[%s0 + $0x8] sm:$0xff]
  %v34 = vld [vmem:[%s0 + $0x10] sm:$0xff]
  %v35 = vld [vmem:[%s0 + $0x18] sm:$0xff]
  %v36 = vunpack.c.l.s8.bf16 %v32
  %v37 = vunpack.c.h.s8.bf16 %v32
  %v38 = vunpack.c.l.s8.bf16 %v33
  %v39 = vunpack.c.h.s8.bf16 %v33
  %v40 = vunpack.c.l.s8.bf16 %v34
  %v41 = vunpack.c.h.s8.bf16 %v34
  %v42 = vunpack.c.l.s8.bf16 %v35
  %v43 = vunpack.c.h.s8.bf16 %v35
  %s44 = smul.u32 0, 128
  %v45 = vld [vmem:[#allocation2] sm:$0xff]
  %v46 = vld [vmem:[#allocation2 + $0x8] sm:$0xff]
  %v47 = vld [vmem:[#allocation2 + $0x10] sm:$0xff]
  %v48 = vld [vmem:[#allocation2 + $0x18] sm:$0xff]
  %v49 = vld [vmem:[#allocation2 + $0x20] sm:$0xff]
  %v50 = vld [vmem:[#allocation2 + $0x28] sm:$0xff]
  %v51 = vld [vmem:[#allocation2 + $0x30] sm:$0xff]
  %v52 = vld [vmem:[#allocation2 + $0x38] sm:$0xff]
  %v53 = vld [vmem:[#allocation2 + $0x40] sm:$0xff]
  %v54 = vld [vmem:[#allocation2 + $0x48] sm:$0xff]
  %v55 = vld [vmem:[#allocation2 + $0x50] sm:$0xff]
  %v56 = vld [vmem:[#allocation2 + $0x58] sm:$0xff]
  %v57 = vld [vmem:[#allocation2 + $0x60] sm:$0xff]
  %v58 = vld [vmem:[#allocation2 + $0x68] sm:$0xff]
  %v59 = vld [vmem:[#allocation2 + $0x70] sm:$0xff]
  %v60 = vld [vmem:[#allocation2 + $0x78] sm:$0xff]
  %s61 = sshra.s32 %s44, 3
  %s62 = sand.u32 %s44, 7
  %s63 = smul.addr %s61, 4
  %s64 = scalar_lea.vmem %s1, %s63
  %v65 = vld [vmem:[%s64] sm:$0xf]
  %v66 = vld [vmem:[%s64 + $0x4] sm:$0xf]
  %v67 = vld [vmem:[%s64 + $0x8] sm:$0xf]
  %v68 = vld [vmem:[%s64 + $0xc] sm:$0xf]
  %v69 = vld [vmem:[%s64 + $0x10] sm:$0xf]
  %v70 = vld [vmem:[%s64 + $0x14] sm:$0xf]
  %v71 = vld [vmem:[%s64 + $0x18] sm:$0xf]
  %v72 = vld [vmem:[%s64 + $0x1c] sm:$0xf]
  %v73 = vld [vmem:[%s64 + $0x20] sm:$0xf]
  %v74 = vld [vmem:[%s64 + $0x24] sm:$0xf]
  %v75 = vld [vmem:[%s64 + $0x28] sm:$0xf]
  %v76 = vld [vmem:[%s64 + $0x2c] sm:$0xf]
  %v77 = vld [vmem:[%s64 + $0x30] sm:$0xf]
  %v78 = vld [vmem:[%s64 + $0x34] sm:$0xf]
  %v79 = vld [vmem:[%s64 + $0x38] sm:$0xf]
  %v80 = vld [vmem:[%s64 + $0x3c] sm:$0xf]
  %v97 = vunpack.c.l.b16 %v65
  %v98 = vunpack.c.l.b16 %v66
  %v99 = vunpack.c.l.b16 %v67
  %v100 = vunpack.c.l.b16 %v68
  %v101 = vunpack.c.l.b16 %v69
  %v102 = vunpack.c.l.b16 %v70
  %v103 = vunpack.c.l.b16 %v71
  %v104 = vunpack.c.l.b16 %v72
  %v105 = vunpack.c.l.b16 %v73
  %v106 = vunpack.c.l.b16 %v74
  %v107 = vunpack.c.l.b16 %v75
  %v108 = vunpack.c.l.b16 %v76
  %v109 = vunpack.c.l.b16 %v77
  %v110 = vunpack.c.l.b16 %v78
  %v111 = vunpack.c.l.b16 %v79
  %v112 = vunpack.c.l.b16 %v80
  %v113 = vpack.c.b16 %v98, %v97
  %v114 = vpack.c.b16 %v100, %v99
  %v115 = vpack.c.b16 %v102, %v101
  %v116 = vpack.c.b16 %v104, %v103
  %v117 = vpack.c.b16 %v106, %v105
  %v118 = vpack.c.b16 %v108, %v107
  %v119 = vpack.c.b16 %v110, %v109
  %v120 = vpack.c.b16 %v112, %v111
  %129 = vmatprep.subr.bf16.mxu0 0
  %130 = vmatpush1.bf16.msra.mxu0 %v113
  %131 = vmatprep.subr.bf16.mxu0 0
  %132 = vmatpush1.bf16.msra.mxu0 %v114
  %133 = vmatprep.subr.bf16.mxu0 0
  %134 = vmatpush1.bf16.msra.mxu0 %v115
  %135 = vmatprep.subr.bf16.mxu0 0
  %136 = vmatpush1.bf16.msra.mxu0 %v116
  %137 = vmatprep.subr.bf16.mxu0 0
  %138 = vmatpush1.bf16.msra.mxu0 %v117
  %139 = vmatprep.subr.bf16.mxu0 0
  %140 = vmatpush1.bf16.msra.mxu0 %v118
  %141 = vmatprep.subr.bf16.mxu0 0
  %142 = vmatpush1.bf16.msra.mxu0 %v119
  %143 = vmatprep.subr.bf16.mxu0 0
  %144 = vmatpush1.bf16.msra.mxu0 %v120
  %145 = vmatprep.subr.bf16.mxu0 0
  %146 = vmatpush1.bf16.msra.mxu0 0
  %147 = vmatprep.subr.bf16.mxu0 0
  %148 = vmatpush1.bf16.msra.mxu0 0
  %149 = vmatprep.subr.bf16.mxu0 0
  %150 = vmatpush1.bf16.msra.mxu0 0
  %151 = vmatprep.subr.bf16.mxu0 0
  %152 = vmatpush1.bf16.msra.mxu0 0
  %153 = vmatprep.subr.bf16.mxu0 0
  %154 = vmatpush1.bf16.msra.mxu0 0
  %155 = vmatprep.subr.bf16.mxu0 0
  %156 = vmatpush1.bf16.msra.mxu0 0
  %157 = vmatprep.subr.bf16.mxu0 0
  %158 = vmatpush1.bf16.msra.mxu0 0
  %159 = vmatprep.subr.bf16.mxu0 0
  %160 = vmatpush1.bf16.msra.mxu0 0
  %161 = vmatprep.mubr.bf16.mxu0 0
  %162 = vmatmul.mubr.bf16.gmra.mrb[0].mxu0 %v36
  %v163 = vpop.f32.mrb[0].mxu0
  %v164 = vadd.f32 0.0, %v163
  %v165 = vpop.f32.mrb[0].mxu0
  %v166 = vpop.f32.mrb[0].mxu0
  %v167 = vadd.f32 0.0, %v166
  %v168 = vpop.f32.mrb[0].mxu0
  %169 = vmatprep.mubr.bf16.mxu0 0
  %170 = vmatmul.mubr.bf16.gmra.mrb[0].mxu0 %v37
  %v171 = vpop.f32.mrb[0].mxu0
  %v172 = vadd.f32 0.0, %v171
  %v173 = vpop.f32.mrb[0].mxu0
  %v174 = vpop.f32.mrb[0].mxu0
  %v175 = vadd.f32 0.0, %v174
  %v176 = vpop.f32.mrb[0].mxu0
  %177 = vmatprep.mubr.bf16.mxu0 0
  %178 = vmatmul.mubr.bf16.gmra.mrb[0].mxu0 %v38
  %v179 = vpop.f32.mrb[0].mxu0
  %v180 = vadd.f32 0.0, %v179
  %v181 = vpop.f32.mrb[0].mxu0
  %v182 = vpop.f32.mrb[0].mxu0
  %v183 = vadd.f32 0.0, %v182
  %v184 = vpop.f32.mrb[0].mxu0
  %185 = vmatprep.mubr.bf16.mxu0 0
  %186 = vmatmul.mubr.bf16.gmra.mrb[0].mxu0 %v39
  %v187 = vpop.f32.mrb[0].mxu0
  %v188 = vadd.f32 0.0, %v187
  %v189 = vpop.f32.mrb[0].mxu0
  %v190 = vpop.f32.mrb[0].mxu0
  %v191 = vadd.f32 0.0, %v190
  %v192 = vpop.f32.mrb[0].mxu0
  %193 = vmatprep.mubr.bf16.mxu0 0
  %194 = vmatmul.mubr.bf16.gmra.mrb[0].mxu0 %v40
  %v195 = vpop.f32.mrb[0].mxu0
  %v196 = vadd.f32 0.0, %v195
  %v197 = vpop.f32.mrb[0].mxu0
  %v198 = vpop.f32.mrb[0].mxu0
  %v199 = vadd.f32 0.0, %v198
  %v200 = vpop.f32.mrb[0].mxu0
  %201 = vmatprep.mubr.bf16.mxu0 0
  %202 = vmatmul.mubr.bf16.gmra.mrb[0].mxu0 %v41
  %v203 = vpop.f32.mrb[0].mxu0
  %v204 = vadd.f32 0.0, %v203
  %v205 = vpop.f32.mrb[0].mxu0
  %v206 = vpop.f32.mrb[0].mxu0
  %v207 = vadd.f32 0.0, %v206
  %v208 = vpop.f32.mrb[0].mxu0
  %209 = vmatprep.mubr.bf16.mxu0 0
  %210 = vmatmul.mubr.bf16.gmra.mrb[0].mxu0 %v42
  %v211 = vpop.f32.mrb[0].mxu0
  %v212 = vadd.f32 0.0, %v211
  %v213 = vpop.f32.mrb[0].mxu0
  %v214 = vpop.f32.mrb[0].mxu0
  %v215 = vadd.f32 0.0, %v214
  %v216 = vpop.f32.mrb[0].mxu0
  %217 = vmatprep.mubr.bf16.mxu0 0
  %218 = vmatmul.mubr.bf16.gmra.mrb[0].mxu0 %v43
  %v219 = vpop.f32.mrb[0].mxu0
  %v220 = vadd.f32 0.0, %v219
  %v221 = vpop.f32.mrb[0].mxu0
  %v222 = vpop.f32.mrb[0].mxu0
  %v223 = vadd.f32 0.0, %v222
  %v224 = vpop.f32.mrb[0].mxu0
  %225 = vdwg.mxu0
  %v226 = vadd.f32 %v45, %v164
  %v227 = vadd.f32 %v46, %v167
  %v228 = vadd.f32 %v47, %v172
  %v229 = vadd.f32 %v48, %v175
  %v230 = vadd.f32 %v49, %v180
  %v231 = vadd.f32 %v50, %v183
  %v232 = vadd.f32 %v51, %v188
  %v233 = vadd.f32 %v52, %v191
  %v234 = vadd.f32 %v53, %v196
  %v235 = vadd.f32 %v54, %v199
  %v236 = vadd.f32 %v55, %v204
  %v237 = vadd.f32 %v56, %v207
  %v238 = vadd.f32 %v57, %v212
  %v239 = vadd.f32 %v58, %v215
  %v240 = vadd.f32 %v59, %v220
  %v241 = vadd.f32 %v60, %v223
  %242 = vst [vmem:[#allocation2] sm:$0xff] %v226
  %243 = vst [vmem:[#allocation2 + $0x8] sm:$0xff] %v227
  %244 = vst [vmem:[#allocation2 + $0x10] sm:$0xff] %v228
  %245 = vst [vmem:[#allocation2 + $0x18] sm:$0xff] %v229
  %246 = vst [vmem:[#allocation2 + $0x20] sm:$0xff] %v230
  %247 = vst [vmem:[#allocation2 + $0x28] sm:$0xff] %v231
  %248 = vst [vmem:[#allocation2 + $0x30] sm:$0xff] %v232
  %249 = vst [vmem:[#allocation2 + $0x38] sm:$0xff] %v233
  %250 = vst [vmem:[#allocation2 + $0x40] sm:$0xff] %v234
  %251 = vst [vmem:[#allocation2 + $0x48] sm:$0xff] %v235
  %252 = vst [vmem:[#allocation2 + $0x50] sm:$0xff] %v236
  %253 = vst [vmem:[#allocation2 + $0x58] sm:$0xff] %v237
  %254 = vst [vmem:[#allocation2 + $0x60] sm:$0xff] %v238
  %255 = vst [vmem:[#allocation2 + $0x68] sm:$0xff] %v239
  %256 = vst [vmem:[#allocation2 + $0x70] sm:$0xff] %v240
  %257 = vst [vmem:[#allocation2 + $0x78] sm:$0xff] %v241
  // Predicated region
  $region14: #{gcn_forward.4} parent=0 // pred_check
    %p258 = pneg %p12
  $region15: #{gcn_forward.4} parent=0 // pred_check_branch
    %260 = sbr.rel (%p258) target = $region17
  $region16: #{gcn_forward.4} parent=0 // pred_region
    %v261 = vld [vmem:[#allocation2] sm:$0xff]
    %v262 = vld [vmem:[#allocation2 + $0x8] sm:$0xff]
    %v263 = vld [vmem:[#allocation2 + $0x10] sm:$0xff]
    %v264 = vld [vmem:[#allocation2 + $0x18] sm:$0xff]
    %v265 = vld [vmem:[#allocation2 + $0x20] sm:$0xff]
    %v266 = vld [vmem:[#allocation2 + $0x28] sm:$0xff]
    %v267 = vld [vmem:[#allocation2 + $0x30] sm:$0xff]
    %v268 = vld [vmem:[#allocation2 + $0x38] sm:$0xff]
    %v269 = vld [vmem:[#allocation2 + $0x40] sm:$0xff]
    %v270 = vld [vmem:[#allocation2 + $0x48] sm:$0xff]
    %v271 = vld [vmem:[#allocation2 + $0x50] sm:$0xff]
    %v272 = vld [vmem:[#allocation2 + $0x58] sm:$0xff]
    %v273 = vld [vmem:[#allocation2 + $0x60] sm:$0xff]
    %v274 = vld [vmem:[#allocation2 + $0x68] sm:$0xff]
    %v275 = vld [vmem:[#allocation2 + $0x70] sm:$0xff]
    %v276 = vld [vmem:[#allocation2 + $0x78] sm:$0xff]
    %v277 = vmul.f32 %v261, 0.007874016
    %v278 = vmul.f32 %v262, 0.007874016
    %v279 = vmul.f32 %v263, 0.007874016
    %v280 = vmul.f32 %v264, 0.007874016
    %v281 = vmul.f32 %v265, 0.007874016
    %v282 = vmul.f32 %v266, 0.007874016
    %v283 = vmul.f32 %v267, 0.007874016
    %v284 = vmul.f32 %v268, 0.007874016
    %v285 = vmul.f32 %v269, 0.007874016
    %v286 = vmul.f32 %v270, 0.007874016
    %v287 = vmul.f32 %v271, 0.007874016
    %v288 = vmul.f32 %v272, 0.007874016
    %v289 = vmul.f32 %v273, 0.007874016
    %v290 = vmul.f32 %v274, 0.007874016
    %v291 = vmul.f32 %v275, 0.007874016
    %v292 = vmul.f32 %v276, 0.007874016
    %v293 = vpack.c.bf16 %v278, %v277
    %v294 = vpack.c.bf16 %v280, %v279
    %v295 = vpack.c.bf16 %v282, %v281
    %v296 = vpack.c.bf16 %v284, %v283
    %v297 = vpack.c.bf16 %v286, %v285
    %v298 = vpack.c.bf16 %v288, %v287
    %v299 = vpack.c.bf16 %v290, %v289
    %v300 = vpack.c.bf16 %v292, %v291
    %v309 = vunpack.c.l.b16 %v293
    %v310 = vunpack.c.h.b16 %v293
    %v311 = vunpack.c.l.b16 %v294
    %v312 = vunpack.c.h.b16 %v294
    %v313 = vunpack.c.l.b16 %v295
    %v314 = vunpack.c.h.b16 %v295
    %v315 = vunpack.c.l.b16 %v296
    %v316 = vunpack.c.h.b16 %v296
    %v317 = vunpack.c.l.b16 %v297
    %v318 = vunpack.c.h.b16 %v297
    %v319 = vunpack.c.l.b16 %v298
    %v320 = vunpack.c.h.b16 %v298
    %v321 = vunpack.c.l.b16 %v299
    %v322 = vunpack.c.h.b16 %v299
    %v323 = vunpack.c.l.b16 %v300
    %v324 = vunpack.c.h.b16 %v300
    %v325 = vpack.c.b16 %v309, %v309
    %v326 = vpack.c.b16 %v310, %v310
    %v327 = vpack.c.b16 %v311, %v311
    %v328 = vpack.c.b16 %v312, %v312
    %v329 = vpack.c.b16 %v313, %v313
    %v330 = vpack.c.b16 %v314, %v314
    %v331 = vpack.c.b16 %v315, %v315
    %v332 = vpack.c.b16 %v316, %v316
    %v333 = vpack.c.b16 %v317, %v317
    %v334 = vpack.c.b16 %v318, %v318
    %v335 = vpack.c.b16 %v319, %v319
    %v336 = vpack.c.b16 %v320, %v320
    %v337 = vpack.c.b16 %v321, %v321
    %v338 = vpack.c.b16 %v322, %v322
    %v339 = vpack.c.b16 %v323, %v323
    %v340 = vpack.c.b16 %v324, %v324
    %357 = vst [vmem:[%s2] sm:$0xf] %v325
    %358 = vst [vmem:[%s2 + $0x4] sm:$0xf] %v326
    %359 = vst [vmem:[%s2 + $0x8] sm:$0xf] %v327
    %360 = vst [vmem:[%s2 + $0xc] sm:$0xf] %v328
    %361 = vst [vmem:[%s2 + $0x10] sm:$0xf] %v329
    %362 = vst [vmem:[%s2 + $0x14] sm:$0xf] %v330
    %363 = vst [vmem:[%s2 + $0x18] sm:$0xf] %v331
    %364 = vst [vmem:[%s2 + $0x1c] sm:$0xf] %v332
    %365 = vst [vmem:[%s2 + $0x20] sm:$0xf] %v333
    %366 = vst [vmem:[%s2 + $0x24] sm:$0xf] %v334
    %367 = vst [vmem:[%s2 + $0x28] sm:$0xf] %v335
    %368 = vst [vmem:[%s2 + $0x2c] sm:$0xf] %v336
    %369 = vst [vmem:[%s2 + $0x30] sm:$0xf] %v337
    %370 = vst [vmem:[%s2 + $0x34] sm:$0xf] %v338
    %371 = vst [vmem:[%s2 + $0x38] sm:$0xf] %v339
    %372 = vst [vmem:[%s2 + $0x3c] sm:$0xf] %v340
  $region17: #{gcn_forward.4} parent=0 // pred_fallthru
    _
  // Predicated region
  $region18: #{gcn_forward.4} parent=0 // pred_check
    _
  $region19: #{gcn_forward.4} parent=0 // pred_check_branch
    %374 = sbr.rel (0) target = $region21
  $region20: #{gcn_forward.4} parent=0 // pred_region
    _
  $region21: #{gcn_forward.4} parent=0 // pred_fallthru
    _
  // Predicated region
  $region22: #{gcn_forward.4} parent=0 // pred_check
    _
  $region23: #{gcn_forward.4} parent=0 // pred_check_branch
    %376 = sbr.rel (0) target = $region25
  $region24: #{gcn_forward.4} parent=0 // pred_region
    _
  $region25: #{gcn_forward.4} parent=0 // pred_fallthru
    _

// kernel: gcn_forward.5
$region0: #{gcn_forward.5}
  #allocation0 [shape = 'u32[]', space=smem, size = 0x4, offset = 0x4, fixed_abs, tag = 'smem constant byte address 0x4 - core index']
  #allocation1 [shape = 'u32[144,128]{1,0:T(1,128)}', space=vmem, size = 0x12000, scoped, tag = 'internal scratch']
  %s0 = inlined_call_operand.vmem [shape: s8[128,128], index: 0, kind: input, shape index: {}]
  %s1 = inlined_call_operand.vmem [shape: bf16[128,128], index: 1, kind: input, shape index: {}]
  %s2 = inlined_call_operand.vmem [shape: f32[128,128], index: 2, kind: output, shape index: {}]
  %s3 = sld [smem:[#allocation0]]
  $region26: #{gcn_forward.5} parent=0
    _
  %s5 = ssub.s32 1, %s3
  %s6 = scalar_select 0, %s5, %s3
  // Predicated region
  $region2: #{gcn_forward.5} parent=0 // pred_check
    _
  $region3: #{gcn_forward.5} parent=0 // pred_check_branch
    %8 = sbr.rel (0) target = $region5
  $region4: #{gcn_forward.5} parent=0 // pred_region
    _
  $region5: #{gcn_forward.5} parent=0 // pred_fallthru
    _
  // Predicated region
  $region6: #{gcn_forward.5} parent=0 // pred_check
    _
  $region7: #{gcn_forward.5} parent=0 // pred_check_branch
    %10 = sbr.rel (0) target = $region9
  $region8: #{gcn_forward.5} parent=0 // pred_region
    _
  $region9: #{gcn_forward.5} parent=0 // pred_fallthru
    _
  %p12 = scmp.eq.s32.totalorder 0, 0
  // Predicated region
  $region10: #{gcn_forward.5} parent=0 // pred_check
    %p13 = pneg %p12
  $region11: #{gcn_forward.5} parent=0 // pred_check_branch
    %15 = sbr.rel (%p13) target = $region13
  $region12: #{gcn_forward.5} parent=0 // pred_region
    %16 = vst [vmem:[%s2] sm:$0xff] 0.0
    %17 = vst [vmem:[%s2 + $0x8] sm:$0xff] 0.0
    %18 = vst [vmem:[%s2 + $0x10] sm:$0xff] 0.0
    %19 = vst [vmem:[%s2 + $0x18] sm:$0xff] 0.0
    %20 = vst [vmem:[%s2 + $0x20] sm:$0xff] 0.0
    %21 = vst [vmem:[%s2 + $0x28] sm:$0xff] 0.0
    %22 = vst [vmem:[%s2 + $0x30] sm:$0xff] 0.0
    %23 = vst [vmem:[%s2 + $0x38] sm:$0xff] 0.0
    %24 = vst [vmem:[%s2 + $0x40] sm:$0xff] 0.0
    %25 = vst [vmem:[%s2 + $0x48] sm:$0xff] 0.0
    %26 = vst [vmem:[%s2 + $0x50] sm:$0xff] 0.0
    %27 = vst [vmem:[%s2 + $0x58] sm:$0xff] 0.0
    %28 = vst [vmem:[%s2 + $0x60] sm:$0xff] 0.0
    %29 = vst [vmem:[%s2 + $0x68] sm:$0xff] 0.0
    %30 = vst [vmem:[%s2 + $0x70] sm:$0xff] 0.0
    %31 = vst [vmem:[%s2 + $0x78] sm:$0xff] 0.0
  $region13: #{gcn_forward.5} parent=0 // pred_fallthru
    _
  %v32 = vld [vmem:[%s0] sm:$0xff]
  %v33 = vld [vmem:[%s0 + $0x8] sm:$0xff]
  %v34 = vld [vmem:[%s0 + $0x10] sm:$0xff]
  %v35 = vld [vmem:[%s0 + $0x18] sm:$0xff]
  %v36 = vunpack.c.l.s8.bf16 %v32
  %v37 = vunpack.c.h.s8.bf16 %v32
  %v38 = vunpack.c.l.s8.bf16 %v33
  %v39 = vunpack.c.h.s8.bf16 %v33
  %v40 = vunpack.c.l.s8.bf16 %v34
  %v41 = vunpack.c.h.s8.bf16 %v34
  %v42 = vunpack.c.l.s8.bf16 %v35
  %v43 = vunpack.c.h.s8.bf16 %v35
  %s44 = smul.u32 0, 128
  %v45 = vld [vmem:[%s2] sm:$0xff]
  %v46 = vld [vmem:[%s2 + $0x8] sm:$0xff]
  %v47 = vld [vmem:[%s2 + $0x10] sm:$0xff]
  %v48 = vld [vmem:[%s2 + $0x18] sm:$0xff]
  %v49 = vld [vmem:[%s2 + $0x20] sm:$0xff]
  %v50 = vld [vmem:[%s2 + $0x28] sm:$0xff]
  %v51 = vld [vmem:[%s2 + $0x30] sm:$0xff]
  %v52 = vld [vmem:[%s2 + $0x38] sm:$0xff]
  %v53 = vld [vmem:[%s2 + $0x40] sm:$0xff]
  %v54 = vld [vmem:[%s2 + $0x48] sm:$0xff]
  %v55 = vld [vmem:[%s2 + $0x50] sm:$0xff]
  %v56 = vld [vmem:[%s2 + $0x58] sm:$0xff]
  %v57 = vld [vmem:[%s2 + $0x60] sm:$0xff]
  %v58 = vld [vmem:[%s2 + $0x68] sm:$0xff]
  %v59 = vld [vmem:[%s2 + $0x70] sm:$0xff]
  %v60 = vld [vmem:[%s2 + $0x78] sm:$0xff]
  %s61 = sshra.s32 %s44, 3
  %s62 = sand.u32 %s44, 7
  %s63 = smul.addr %s61, 4
  %s64 = scalar_lea.vmem %s1, %s63
  %v65 = vld [vmem:[%s64] sm:$0xf]
  %v66 = vld [vmem:[%s64 + $0x4] sm:$0xf]
  %v67 = vld [vmem:[%s64 + $0x8] sm:$0xf]
  %v68 = vld [vmem:[%s64 + $0xc] sm:$0xf]
  %v69 = vld [vmem:[%s64 + $0x10] sm:$0xf]
  %v70 = vld [vmem:[%s64 + $0x14] sm:$0xf]
  %v71 = vld [vmem:[%s64 + $0x18] sm:$0xf]
  %v72 = vld [vmem:[%s64 + $0x1c] sm:$0xf]
  %v73 = vld [vmem:[%s64 + $0x20] sm:$0xf]
  %v74 = vld [vmem:[%s64 + $0x24] sm:$0xf]
  %v75 = vld [vmem:[%s64 + $0x28] sm:$0xf]
  %v76 = vld [vmem:[%s64 + $0x2c] sm:$0xf]
  %v77 = vld [vmem:[%s64 + $0x30] sm:$0xf]
  %v78 = vld [vmem:[%s64 + $0x34] sm:$0xf]
  %v79 = vld [vmem:[%s64 + $0x38] sm:$0xf]
  %v80 = vld [vmem:[%s64 + $0x3c] sm:$0xf]
  %v97 = vunpack.c.l.b16 %v65
  %v98 = vunpack.c.l.b16 %v66
  %v99 = vunpack.c.l.b16 %v67
  %v100 = vunpack.c.l.b16 %v68
  %v101 = vunpack.c.l.b16 %v69
  %v102 = vunpack.c.l.b16 %v70
  %v103 = vunpack.c.l.b16 %v71
  %v104 = vunpack.c.l.b16 %v72
  %v105 = vunpack.c.l.b16 %v73
  %v106 = vunpack.c.l.b16 %v74
  %v107 = vunpack.c.l.b16 %v75
  %v108 = vunpack.c.l.b16 %v76
  %v109 = vunpack.c.l.b16 %v77
  %v110 = vunpack.c.l.b16 %v78
  %v111 = vunpack.c.l.b16 %v79
  %v112 = vunpack.c.l.b16 %v80
  %v113 = vpack.c.b16 %v98, %v97
  %v114 = vpack.c.b16 %v100, %v99
  %v115 = vpack.c.b16 %v102, %v101
  %v116 = vpack.c.b16 %v104, %v103
  %v117 = vpack.c.b16 %v106, %v105
  %v118 = vpack.c.b16 %v108, %v107
  %v119 = vpack.c.b16 %v110, %v109
  %v120 = vpack.c.b16 %v112, %v111
  %129 = vmatprep.subr.bf16.mxu0 0
  %130 = vmatpush1.bf16.msra.mxu0 %v113
  %131 = vmatprep.subr.bf16.mxu0 0
  %132 = vmatpush1.bf16.msra.mxu0 %v114
  %133 = vmatprep.subr.bf16.mxu0 0
  %134 = vmatpush1.bf16.msra.mxu0 %v115
  %135 = vmatprep.subr.bf16.mxu0 0
  %136 = vmatpush1.bf16.msra.mxu0 %v116
  %137 = vmatprep.subr.bf16.mxu0 0
  %138 = vmatpush1.bf16.msra.mxu0 %v117
  %139 = vmatprep.subr.bf16.mxu0 0
  %140 = vmatpush1.bf16.msra.mxu0 %v118
  %141 = vmatprep.subr.bf16.mxu0 0
  %142 = vmatpush1.bf16.msra.mxu0 %v119
  %143 = vmatprep.subr.bf16.mxu0 0
  %144 = vmatpush1.bf16.msra.mxu0 %v120
  %145 = vmatprep.subr.bf16.mxu0 0
  %146 = vmatpush1.bf16.msra.mxu0 0
  %147 = vmatprep.subr.bf16.mxu0 0
  %148 = vmatpush1.bf16.msra.mxu0 0
  %149 = vmatprep.subr.bf16.mxu0 0
  %150 = vmatpush1.bf16.msra.mxu0 0
  %151 = vmatprep.subr.bf16.mxu0 0
  %152 = vmatpush1.bf16.msra.mxu0 0
  %153 = vmatprep.subr.bf16.mxu0 0
  %154 = vmatpush1.bf16.msra.mxu0 0
  %155 = vmatprep.subr.bf16.mxu0 0
  %156 = vmatpush1.bf16.msra.mxu0 0
  %157 = vmatprep.subr.bf16.mxu0 0
  %158 = vmatpush1.bf16.msra.mxu0 0
  %159 = vmatprep.subr.bf16.mxu0 0
  %160 = vmatpush1.bf16.msra.mxu0 0
  %161 = vmatprep.mubr.bf16.mxu0 0
  %162 = vmatmul.mubr.bf16.gmra.mrb[0].mxu0 %v36
  %v163 = vpop.f32.mrb[0].mxu0
  %v164 = vadd.f32 0.0, %v163
  %v165 = vpop.f32.mrb[0].mxu0
  %v166 = vpop.f32.mrb[0].mxu0
  %v167 = vadd.f32 0.0, %v166
  %v168 = vpop.f32.mrb[0].mxu0
  %169 = vmatprep.mubr.bf16.mxu0 0
  %170 = vmatmul.mubr.bf16.gmra.mrb[0].mxu0 %v37
  %v171 = vpop.f32.mrb[0].mxu0
  %v172 = vadd.f32 0.0, %v171
  %v173 = vpop.f32.mrb[0].mxu0
  %v174 = vpop.f32.mrb[0].mxu0
  %v175 = vadd.f32 0.0, %v174
  %v176 = vpop.f32.mrb[0].mxu0
  %177 = vmatprep.mubr.bf16.mxu0 0
  %178 = vmatmul.mubr.bf16.gmra.mrb[0].mxu0 %v38
  %v179 = vpop.f32.mrb[0].mxu0
  %v180 = vadd.f32 0.0, %v179
  %v181 = vpop.f32.mrb[0].mxu0
  %v182 = vpop.f32.mrb[0].mxu0
  %v183 = vadd.f32 0.0, %v182
  %v184 = vpop.f32.mrb[0].mxu0
  %185 = vmatprep.mubr.bf16.mxu0 0
  %186 = vmatmul.mubr.bf16.gmra.mrb[0].mxu0 %v39
  %v187 = vpop.f32.mrb[0].mxu0
  %v188 = vadd.f32 0.0, %v187
  %v189 = vpop.f32.mrb[0].mxu0
  %v190 = vpop.f32.mrb[0].mxu0
  %v191 = vadd.f32 0.0, %v190
  %v192 = vpop.f32.mrb[0].mxu0
  %193 = vmatprep.mubr.bf16.mxu0 0
  %194 = vmatmul.mubr.bf16.gmra.mrb[0].mxu0 %v40
  %v195 = vpop.f32.mrb[0].mxu0
  %v196 = vadd.f32 0.0, %v195
  %v197 = vpop.f32.mrb[0].mxu0
  %v198 = vpop.f32.mrb[0].mxu0
  %v199 = vadd.f32 0.0, %v198
  %v200 = vpop.f32.mrb[0].mxu0
  %201 = vmatprep.mubr.bf16.mxu0 0
  %202 = vmatmul.mubr.bf16.gmra.mrb[0].mxu0 %v41
  %v203 = vpop.f32.mrb[0].mxu0
  %v204 = vadd.f32 0.0, %v203
  %v205 = vpop.f32.mrb[0].mxu0
  %v206 = vpop.f32.mrb[0].mxu0
  %v207 = vadd.f32 0.0, %v206
  %v208 = vpop.f32.mrb[0].mxu0
  %209 = vmatprep.mubr.bf16.mxu0 0
  %210 = vmatmul.mubr.bf16.gmra.mrb[0].mxu0 %v42
  %v211 = vpop.f32.mrb[0].mxu0
  %v212 = vadd.f32 0.0, %v211
  %v213 = vpop.f32.mrb[0].mxu0
  %v214 = vpop.f32.mrb[0].mxu0
  %v215 = vadd.f32 0.0, %v214
  %v216 = vpop.f32.mrb[0].mxu0
  %217 = vmatprep.mubr.bf16.mxu0 0
  %218 = vmatmul.mubr.bf16.gmra.mrb[0].mxu0 %v43
  %v219 = vpop.f32.mrb[0].mxu0
  %v220 = vadd.f32 0.0, %v219
  %v221 = vpop.f32.mrb[0].mxu0
  %v222 = vpop.f32.mrb[0].mxu0
  %v223 = vadd.f32 0.0, %v222
  %v224 = vpop.f32.mrb[0].mxu0
  %225 = vdwg.mxu0
  %v226 = vadd.f32 %v45, %v164
  %v227 = vadd.f32 %v46, %v167
  %v228 = vadd.f32 %v47, %v172
  %v229 = vadd.f32 %v48, %v175
  %v230 = vadd.f32 %v49, %v180
  %v231 = vadd.f32 %v50, %v183
  %v232 = vadd.f32 %v51, %v188
  %v233 = vadd.f32 %v52, %v191
  %v234 = vadd.f32 %v53, %v196
  %v235 = vadd.f32 %v54, %v199
  %v236 = vadd.f32 %v55, %v204
  %v237 = vadd.f32 %v56, %v207
  %v238 = vadd.f32 %v57, %v212
  %v239 = vadd.f32 %v58, %v215
  %v240 = vadd.f32 %v59, %v220
  %v241 = vadd.f32 %v60, %v223
  %242 = vst [vmem:[%s2] sm:$0xff] %v226
  %243 = vst [vmem:[%s2 + $0x8] sm:$0xff] %v227
  %244 = vst [vmem:[%s2 + $0x10] sm:$0xff] %v228
  %245 = vst [vmem:[%s2 + $0x18] sm:$0xff] %v229
  %246 = vst [vmem:[%s2 + $0x20] sm:$0xff] %v230
  %247 = vst [vmem:[%s2 + $0x28] sm:$0xff] %v231
  %248 = vst [vmem:[%s2 + $0x30] sm:$0xff] %v232
  %249 = vst [vmem:[%s2 + $0x38] sm:$0xff] %v233
  %250 = vst [vmem:[%s2 + $0x40] sm:$0xff] %v234
  %251 = vst [vmem:[%s2 + $0x48] sm:$0xff] %v235
  %252 = vst [vmem:[%s2 + $0x50] sm:$0xff] %v236
  %253 = vst [vmem:[%s2 + $0x58] sm:$0xff] %v237
  %254 = vst [vmem:[%s2 + $0x60] sm:$0xff] %v238
  %255 = vst [vmem:[%s2 + $0x68] sm:$0xff] %v239
  %256 = vst [vmem:[%s2 + $0x70] sm:$0xff] %v240
  %257 = vst [vmem:[%s2 + $0x78] sm:$0xff] %v241
  // Predicated region
  $region14: #{gcn_forward.5} parent=0 // pred_check
    %p258 = pneg %p12
  $region15: #{gcn_forward.5} parent=0 // pred_check_branch
    %260 = sbr.rel (%p258) target = $region17
  $region16: #{gcn_forward.5} parent=0 // pred_region
    %v261 = vld [vmem:[%s2] sm:$0xff]
    %v262 = vld [vmem:[%s2 + $0x8] sm:$0xff]
    %v263 = vld [vmem:[%s2 + $0x10] sm:$0xff]
    %v264 = vld [vmem:[%s2 + $0x18] sm:$0xff]
    %v265 = vld [vmem:[%s2 + $0x20] sm:$0xff]
    %v266 = vld [vmem:[%s2 + $0x28] sm:$0xff]
    %v267 = vld [vmem:[%s2 + $0x30] sm:$0xff]
    %v268 = vld [vmem:[%s2 + $0x38] sm:$0xff]
    %v269 = vld [vmem:[%s2 + $0x40] sm:$0xff]
    %v270 = vld [vmem:[%s2 + $0x48] sm:$0xff]
    %v271 = vld [vmem:[%s2 + $0x50] sm:$0xff]
    %v272 = vld [vmem:[%s2 + $0x58] sm:$0xff]
    %v273 = vld [vmem:[%s2 + $0x60] sm:$0xff]
    %v274 = vld [vmem:[%s2 + $0x68] sm:$0xff]
    %v275 = vld [vmem:[%s2 + $0x70] sm:$0xff]
    %v276 = vld [vmem:[%s2 + $0x78] sm:$0xff]
    %v277 = vmul.f32 %v261, 0.007874016
    %v278 = vmul.f32 %v262, 0.007874016
    %v279 = vmul.f32 %v263, 0.007874016
    %v280 = vmul.f32 %v264, 0.007874016
    %v281 = vmul.f32 %v265, 0.007874016
    %v282 = vmul.f32 %v266, 0.007874016
    %v283 = vmul.f32 %v267, 0.007874016
    %v284 = vmul.f32 %v268, 0.007874016
    %v285 = vmul.f32 %v269, 0.007874016
    %v286 = vmul.f32 %v270, 0.007874016
    %v287 = vmul.f32 %v271, 0.007874016
    %v288 = vmul.f32 %v272, 0.007874016
    %v289 = vmul.f32 %v273, 0.007874016
    %v290 = vmul.f32 %v274, 0.007874016
    %v291 = vmul.f32 %v275, 0.007874016
    %v292 = vmul.f32 %v276, 0.007874016
    %293 = vst [vmem:[%s2] sm:$0xff] %v277
    %294 = vst [vmem:[%s2 + $0x8] sm:$0xff] %v278
    %295 = vst [vmem:[%s2 + $0x10] sm:$0xff] %v279
    %296 = vst [vmem:[%s2 + $0x18] sm:$0xff] %v280
    %297 = vst [vmem:[%s2 + $0x20] sm:$0xff] %v281
    %298 = vst [vmem:[%s2 + $0x28] sm:$0xff] %v282
    %299 = vst [vmem:[%s2 + $0x30] sm:$0xff] %v283
    %300 = vst [vmem:[%s2 + $0x38] sm:$0xff] %v284
    %301 = vst [vmem:[%s2 + $0x40] sm:$0xff] %v285
    %302 = vst [vmem:[%s2 + $0x48] sm:$0xff] %v286
    %303 = vst [vmem:[%s2 + $0x50] sm:$0xff] %v287
    %304 = vst [vmem:[%s2 + $0x58] sm:$0xff] %v288
    %305 = vst [vmem:[%s2 + $0x60] sm:$0xff] %v289
    %306 = vst [vmem:[%s2 + $0x68] sm:$0xff] %v290
    %307 = vst [vmem:[%s2 + $0x70] sm:$0xff] %v291
    %308 = vst [vmem:[%s2 + $0x78] sm:$0xff] %v292
  $region17: #{gcn_forward.5} parent=0 // pred_fallthru
    _
  // Predicated region
  $region18: #{gcn_forward.5} parent=0 // pred_check
    _
  $region19: #{gcn_forward.5} parent=0 // pred_check_branch
    %310 = sbr.rel (0) target = $region21
  $region20: #{gcn_forward.5} parent=0 // pred_region
    _
  $region21: #{gcn_forward.5} parent=0 // pred_fallthru
    _
  // Predicated region
  $region22: #{gcn_forward.5} parent=0 // pred_check
    _
  $region23: #{gcn_forward.5} parent=0 // pred_check_branch
    %312 = sbr.rel (0) target = $region25
  $region24: #{gcn_forward.5} parent=0 // pred_region
    _
  $region25: #{gcn_forward.5} parent=0 // pred_fallthru
    _

// kernel: gcn_forward.3
$region0: #{gcn_forward.3}
  #allocation0 [shape = 'u32[]', space=smem, size = 0x4, offset = 0x4, fixed_abs, tag = 'smem constant byte address 0x4 - core index']
  #allocation1 [shape = 'u32[144,128]{1,0:T(1,128)}', space=vmem, size = 0x12000, scoped, tag = 'internal scratch']
  %s0 = inlined_call_operand.vmem [shape: bf16[128,16], index: 0, kind: input, shape index: {}]
  %s1 = inlined_call_operand.vmem [shape: bf16[16,128], index: 1, kind: input, shape index: {}]
  %s2 = inlined_call_operand.vmem [shape: f32[1,128], index: 2, kind: input, shape index: {}]
  %s3 = inlined_call_operand.vmem [shape: bf16[128,128], index: 3, kind: output, shape index: {}]
  %s4 = sld [smem:[#allocation0]]
  $region22: #{gcn_forward.3} parent=0
    _
  %s6 = ssub.s32 1, %s4
  %s7 = scalar_select 0, %s6, %s4
  // Predicated region
  $region2: #{gcn_forward.3} parent=0 // pred_check
    _
  $region3: #{gcn_forward.3} parent=0 // pred_check_branch
    %9 = sbr.rel (0) target = $region5
  $region4: #{gcn_forward.3} parent=0 // pred_region
    _
  $region5: #{gcn_forward.3} parent=0 // pred_fallthru
    _
  // Predicated region
  $region6: #{gcn_forward.3} parent=0 // pred_check
    _
  $region7: #{gcn_forward.3} parent=0 // pred_check_branch
    %11 = sbr.rel (0) target = $region9
  $region8: #{gcn_forward.3} parent=0 // pred_region
    _
  $region9: #{gcn_forward.3} parent=0 // pred_fallthru
    _
  // Predicated region
  $region10: #{gcn_forward.3} parent=0 // pred_check
    _
  $region11: #{gcn_forward.3} parent=0 // pred_check_branch
    %13 = sbr.rel (0) target = $region13
  $region12: #{gcn_forward.3} parent=0 // pred_region
    _
  $region13: #{gcn_forward.3} parent=0 // pred_fallthru
    _
  %v15 = vld [vmem:[%s0] sm:$0xf]
  %v16 = vld [vmem:[%s0 + $0x4] sm:$0xf]
  %v17 = vld [vmem:[%s0 + $0x8] sm:$0xf]
  %v18 = vld [vmem:[%s0 + $0xc] sm:$0xf]
  %v19 = vld [vmem:[%s0 + $0x10] sm:$0xf]
  %v20 = vld [vmem:[%s0 + $0x14] sm:$0xf]
  %v21 = vld [vmem:[%s0 + $0x18] sm:$0xf]
  %v22 = vld [vmem:[%s0 + $0x1c] sm:$0xf]
  %v23 = vld [vmem:[%s0 + $0x20] sm:$0xf]
  %v24 = vld [vmem:[%s0 + $0x24] sm:$0xf]
  %v25 = vld [vmem:[%s0 + $0x28] sm:$0xf]
  %v26 = vld [vmem:[%s0 + $0x2c] sm:$0xf]
  %v27 = vld [vmem:[%s0 + $0x30] sm:$0xf]
  %v28 = vld [vmem:[%s0 + $0x34] sm:$0xf]
  %v29 = vld [vmem:[%s0 + $0x38] sm:$0xf]
  %v30 = vld [vmem:[%s0 + $0x3c] sm:$0xf]
  %v31 = vld [vmem:[%s1] sm:$0xf]
  %v32 = vld [vmem:[%s1 + $0x4] sm:$0xf]
  %v33 = vld [vmem:[%s2] sm:$0x1]
  %v35 = vlaneseq
  %v36 = vshrl.u32 %v35, 7
  %v37 = vsub.s32 0, %v36
  %v38 = vrot.slane %v33, %v37
  %v56 = vunpack.c.l.b16 %v15
  %v57 = vunpack.c.l.b16 %v16
  %v58 = vunpack.c.l.b16 %v17
  %v59 = vunpack.c.l.b16 %v18
  %v60 = vunpack.c.l.b16 %v19
  %v61 = vunpack.c.l.b16 %v20
  %v62 = vunpack.c.l.b16 %v21
  %v63 = vunpack.c.l.b16 %v22
  %v64 = vunpack.c.l.b16 %v23
  %v65 = vunpack.c.l.b16 %v24
  %v66 = vunpack.c.l.b16 %v25
  %v67 = vunpack.c.l.b16 %v26
  %v68 = vunpack.c.l.b16 %v27
  %v69 = vunpack.c.l.b16 %v28
  %v70 = vunpack.c.l.b16 %v29
  %v71 = vunpack.c.l.b16 %v30
  %v72 = vpack.c.b16 %v57, %v56
  %v73 = vpack.c.b16 %v59, %v58
  %v74 = vpack.c.b16 %v61, %v60
  %v75 = vpack.c.b16 %v63, %v62
  %v76 = vpack.c.b16 %v65, %v64
  %v77 = vpack.c.b16 %v67, %v66
  %v78 = vpack.c.b16 %v69, %v68
  %v79 = vpack.c.b16 %v71, %v70
  %v82 = vunpack.c.l.b16 %v31
  %v83 = vunpack.c.l.b16 %v32
  %v84 = vpack.c.b16 %v83, %v82
  %vm86 = vcmask 130048
  %v88 = vsel %vm86, %v72, 0
  %v91 = vsel %vm86, %v73, 0
  %v94 = vsel %vm86, %v74, 0
  %v97 = vsel %vm86, %v75, 0
  %v100 = vsel %vm86, %v76, 0
  %v103 = vsel %vm86, %v77, 0
  %v106 = vsel %vm86, %v78, 0
  %v109 = vsel %vm86, %v79, 0
  %111 = vmatprep.subr.bf16.mxu0 0
  %112 = vmatpush1.bf16.msra.mxu0 %v84
  %113 = vmatprep.subr.bf16.mxu0 0
  %114 = vmatpush1.bf16.msra.mxu0 0
  %115 = vmatprep.subr.bf16.mxu0 0
  %116 = vmatpush1.bf16.msra.mxu0 0
  %117 = vmatprep.subr.bf16.mxu0 0
  %118 = vmatpush1.bf16.msra.mxu0 0
  %119 = vmatprep.subr.bf16.mxu0 0
  %120 = vmatpush1.bf16.msra.mxu0 0
  %121 = vmatprep.subr.bf16.mxu0 0
  %122 = vmatpush1.bf16.msra.mxu0 0
  %123 = vmatprep.subr.bf16.mxu0 0
  %124 = vmatpush1.bf16.msra.mxu0 0
  %125 = vmatprep.subr.bf16.mxu0 0
  %126 = vmatpush1.bf16.msra.mxu0 0
  %127 = vmatprep.subr.bf16.mxu0 0
  %128 = vmatpush1.bf16.msra.mxu0 0
  %129 = vmatprep.subr.bf16.mxu0 0
  %130 = vmatpush1.bf16.msra.mxu0 0
  %131 = vmatprep.subr.bf16.mxu0 0
  %132 = vmatpush1.bf16.msra.mxu0 0
  %133 = vmatprep.subr.bf16.mxu0 0
  %134 = vmatpush1.bf16.msra.mxu0 0
  %135 = vmatprep.subr.bf16.mxu0 0
  %136 = vmatpush1.bf16.msra.mxu0 0
  %137 = vmatprep.subr.bf16.mxu0 0
  %138 = vmatpush1.bf16.msra.mxu0 0
  %139 = vmatprep.subr.bf16.mxu0 0
  %140 = vmatpush1.bf16.msra.mxu0 0
  %141 = vmatprep.subr.bf16.mxu0 0
  %142 = vmatpush1.bf16.msra.mxu0 0
  %143 = vmatprep.mubr.bf16.mxu0 0
  %144 = vmatmul.mubr.bf16.gmra.mrb[0].mxu0 %v88
  %v145 = vpop.f32.mrb[0].mxu0
  %v146 = vadd.f32 %v38, %v145
  %v147 = vpop.f32.mrb[0].mxu0
  %v148 = vpop.f32.mrb[0].mxu0
  %v149 = vadd.f32 %v38, %v148
  %v150 = vpop.f32.mrb[0].mxu0
  %151 = vmatprep.mubr.bf16.mxu0 0
  %152 = vmatmul.mubr.bf16.gmra.mrb[0].mxu0 %v91
  %v153 = vpop.f32.mrb[0].mxu0
  %v154 = vadd.f32 %v38, %v153
  %v155 = vpop.f32.mrb[0].mxu0
  %v156 = vpop.f32.mrb[0].mxu0
  %v157 = vadd.f32 %v38, %v156
  %v158 = vpop.f32.mrb[0].mxu0
  %159 = vmatprep.mubr.bf16.mxu0 0
  %160 = vmatmul.mubr.bf16.gmra.mrb[0].mxu0 %v94
  %v161 = vpop.f32.mrb[0].mxu0
  %v162 = vadd.f32 %v38, %v161
  %v163 = vpop.f32.mrb[0].mxu0
  %v164 = vpop.f32.mrb[0].mxu0
  %v165 = vadd.f32 %v38, %v164
  %v166 = vpop.f32.mrb[0].mxu0
  %167 = vmatprep.mubr.bf16.mxu0 0
  %168 = vmatmul.mubr.bf16.gmra.mrb[0].mxu0 %v97
  %v169 = vpop.f32.mrb[0].mxu0
  %v170 = vadd.f32 %v38, %v169
  %v171 = vpop.f32.mrb[0].mxu0
  %v172 = vpop.f32.mrb[0].mxu0
  %v173 = vadd.f32 %v38, %v172
  %v174 = vpop.f32.mrb[0].mxu0
  %175 = vmatprep.mubr.bf16.mxu0 0
  %176 = vmatmul.mubr.bf16.gmra.mrb[0].mxu0 %v100
  %v177 = vpop.f32.mrb[0].mxu0
  %v178 = vadd.f32 %v38, %v177
  %v179 = vpop.f32.mrb[0].mxu0
  %v180 = vpop.f32.mrb[0].mxu0
  %v181 = vadd.f32 %v38, %v180
  %v182 = vpop.f32.mrb[0].mxu0
  %183 = vmatprep.mubr.bf16.mxu0 0
  %184 = vmatmul.mubr.bf16.gmra.mrb[0].mxu0 %v103
  %v185 = vpop.f32.mrb[0].mxu0
  %v186 = vadd.f32 %v38, %v185
  %v187 = vpop.f32.mrb[0].mxu0
  %v188 = vpop.f32.mrb[0].mxu0
  %v189 = vadd.f32 %v38, %v188
  %v190 = vpop.f32.mrb[0].mxu0
  %191 = vmatprep.mubr.bf16.mxu0 0
  %192 = vmatmul.mubr.bf16.gmra.mrb[0].mxu0 %v106
  %v193 = vpop.f32.mrb[0].mxu0
  %v194 = vadd.f32 %v38, %v193
  %v195 = vpop.f32.mrb[0].mxu0
  %v196 = vpop.f32.mrb[0].mxu0
  %v197 = vadd.f32 %v38, %v196
  %v198 = vpop.f32.mrb[0].mxu0
  %199 = vmatprep.mubr.bf16.mxu0 0
  %200 = vmatmul.mubr.bf16.gmra.mrb[0].mxu0 %v109
  %v201 = vpop.f32.mrb[0].mxu0
  %v202 = vadd.f32 %v38, %v201
  %v203 = vpop.f32.mrb[0].mxu0
  %v204 = vpop.f32.mrb[0].mxu0
  %v205 = vadd.f32 %v38, %v204
  %v206 = vpop.f32.mrb[0].mxu0
  %207 = vdwg.mxu0
  %s208 = smul.u32 0, 128
  %v209 = vlaneseq
  %v210 = vshrl.u32 %v209, 7
  %v211 = vadd.s32 %v210, 8
  %v212 = vadd.s32 %v210, 16
  %v213 = vadd.s32 %v210, 24
  %v214 = vadd.s32 %v210, 32
  %v215 = vadd.s32 %v210, 40
  %v216 = vadd.s32 %v210, 48
  %v217 = vadd.s32 %v210, 56
  %v218 = vadd.s32 %v210, 64
  %v219 = vadd.s32 %v210, 72
  %v220 = vadd.s32 %v210, 80
  %v221 = vadd.s32 %v210, 88
  %v222 = vadd.s32 %v210, 96
  %v223 = vadd.s32 %v210, 104
  %v224 = vadd.s32 %v210, 112
  %v225 = vadd.s32 %v210, 120
  %v226 = vstv %s208
  %v227 = vadd.s32 %v226, %v210
  %v228 = vadd.s32 %v226, %v211
  %v229 = vadd.s32 %v226, %v212
  %v230 = vadd.s32 %v226, %v213
  %v231 = vadd.s32 %v226, %v214
  %v232 = vadd.s32 %v226, %v215
  %v233 = vadd.s32 %v226, %v216
  %v234 = vadd.s32 %v226, %v217
  %v235 = vadd.s32 %v226, %v218
  %v236 = vadd.s32 %v226, %v219
  %v237 = vadd.s32 %v226, %v220
  %v238 = vadd.s32 %v226, %v221
  %v239 = vadd.s32 %v226, %v222
  %v240 = vadd.s32 %v226, %v223
  %v241 = vadd.s32 %v226, %v224
  %v242 = vadd.s32 %v226, %v225
  %vm243 = vcmp.lt.s32.totalorder %v227, 64
  %vm244 = vcmp.lt.s32.totalorder %v228, 64
  %vm245 = vcmp.lt.s32.totalorder %v229, 64
  %vm246 = vcmp.lt.s32.totalorder %v230, 64
  %vm247 = vcmp.lt.s32.totalorder %v231, 64
  %vm248 = vcmp.lt.s32.totalorder %v232, 64
  %vm249 = vcmp.lt.s32.totalorder %v233, 64
  %vm250 = vcmp.lt.s32.totalorder %v234, 64
  %vm251 = vcmp.lt.s32.totalorder %v235, 64
  %vm252 = vcmp.lt.s32.totalorder %v236, 64
  %vm253 = vcmp.lt.s32.totalorder %v237, 64
  %vm254 = vcmp.lt.s32.totalorder %v238, 64
  %vm255 = vcmp.lt.s32.totalorder %v239, 64
  %vm256 = vcmp.lt.s32.totalorder %v240, 64
  %vm257 = vcmp.lt.s32.totalorder %v241, 64
  %vm258 = vcmp.lt.s32.totalorder %v242, 64
  %v259 = vsel %vm243, %v146, 0.0
  %v260 = vsel %vm244, %v149, 0.0
  %v261 = vsel %vm245, %v154, 0.0
  %v262 = vsel %vm246, %v157, 0.0
  %v263 = vsel %vm247, %v162, 0.0
  %v264 = vsel %vm248, %v165, 0.0
  %v265 = vsel %vm249, %v170, 0.0
  %v266 = vsel %vm250, %v173, 0.0
  %v267 = vsel %vm251, %v178, 0.0
  %v268 = vsel %vm252, %v181, 0.0
  %v269 = vsel %vm253, %v186, 0.0
  %v270 = vsel %vm254, %v189, 0.0
  %v271 = vsel %vm255, %v194, 0.0
  %v272 = vsel %vm256, %v197, 0.0
  %v273 = vsel %vm257, %v202, 0.0
  %v274 = vsel %vm258, %v205, 0.0
  %v275 = vpack.c.bf16 %v260, %v259
  %v276 = vpack.c.bf16 %v262, %v261
  %v277 = vpack.c.bf16 %v264, %v263
  %v278 = vpack.c.bf16 %v266, %v265
  %v279 = vpack.c.bf16 %v268, %v267
  %v280 = vpack.c.bf16 %v270, %v269
  %v281 = vpack.c.bf16 %v272, %v271
  %v282 = vpack.c.bf16 %v274, %v273
  %v291 = vunpack.c.l.b16 %v275
  %v292 = vunpack.c.h.b16 %v275
  %v293 = vunpack.c.l.b16 %v276
  %v294 = vunpack.c.h.b16 %v276
  %v295 = vunpack.c.l.b16 %v277
  %v296 = vunpack.c.h.b16 %v277
  %v297 = vunpack.c.l.b16 %v278
  %v298 = vunpack.c.h.b16 %v278
  %v299 = vunpack.c.l.b16 %v279
  %v300 = vunpack.c.h.b16 %v279
  %v301 = vunpack.c.l.b16 %v280
  %v302 = vunpack.c.h.b16 %v280
  %v303 = vunpack.c.l.b16 %v281
  %v304 = vunpack.c.h.b16 %v281
  %v305 = vunpack.c.l.b16 %v282
  %v306 = vunpack.c.h.b16 %v282
  %v307 = vpack.c.b16 %v291, %v291
  %v308 = vpack.c.b16 %v292, %v292
  %v309 = vpack.c.b16 %v293, %v293
  %v310 = vpack.c.b16 %v294, %v294
  %v311 = vpack.c.b16 %v295, %v295
  %v312 = vpack.c.b16 %v296, %v296
  %v313 = vpack.c.b16 %v297, %v297
  %v314 = vpack.c.b16 %v298, %v298
  %v315 = vpack.c.b16 %v299, %v299
  %v316 = vpack.c.b16 %v300, %v300
  %v317 = vpack.c.b16 %v301, %v301
  %v318 = vpack.c.b16 %v302, %v302
  %v319 = vpack.c.b16 %v303, %v303
  %v320 = vpack.c.b16 %v304, %v304
  %v321 = vpack.c.b16 %v305, %v305
  %v322 = vpack.c.b16 %v306, %v306
  %339 = vst [vmem:[%s3] sm:$0xf] %v307
  %340 = vst [vmem:[%s3 + $0x4] sm:$0xf] %v308
  %341 = vst [vmem:[%s3 + $0x8] sm:$0xf] %v309
  %342 = vst [vmem:[%s3 + $0xc] sm:$0xf] %v310
  %343 = vst [vmem:[%s3 + $0x10] sm:$0xf] %v311
  %344 = vst [vmem:[%s3 + $0x14] sm:$0xf] %v312
  %345 = vst [vmem:[%s3 + $0x18] sm:$0xf] %v313
  %346 = vst [vmem:[%s3 + $0x1c] sm:$0xf] %v314
  %347 = vst [vmem:[%s3 + $0x20] sm:$0xf] %v315
  %348 = vst [vmem:[%s3 + $0x24] sm:$0xf] %v316
  %349 = vst [vmem:[%s3 + $0x28] sm:$0xf] %v317
  %350 = vst [vmem:[%s3 + $0x2c] sm:$0xf] %v318
  %351 = vst [vmem:[%s3 + $0x30] sm:$0xf] %v319
  %352 = vst [vmem:[%s3 + $0x34] sm:$0xf] %v320
  %353 = vst [vmem:[%s3 + $0x38] sm:$0xf] %v321
  %354 = vst [vmem:[%s3 + $0x3c] sm:$0xf] %v322
  // Predicated region
  $region14: #{gcn_forward.3} parent=0 // pred_check
    _
  $region15: #{gcn_forward.3} parent=0 // pred_check_branch
    %356 = sbr.rel (0) target = $region17
  $region16: #{gcn_forward.3} parent=0 // pred_region
    _
  $region17: #{gcn_forward.3} parent=0 // pred_fallthru
    _
  // Predicated region
  $region18: #{gcn_forward.3} parent=0 // pred_check
    _
  $region19: #{gcn_forward.3} parent=0 // pred_check_branch
    %358 = sbr.rel (0) target = $region21
  $region20: #{gcn_forward.3} parent=0 // pred_region
    _
  $region21: #{gcn_forward.3} parent=0 // pred_fallthru
    _

</llo_original>
